<compile_context>
chip_gen: v5e
topology: v5e:2x2
jax: 0.10.0
libtpu: 0.0.40
codegen_flags: <defaults>
</compile_context>

<pallas_src>
import math
from functools import partial

import jax
import jax.numpy as jnp
from jax.experimental import pallas as pl
from jax.experimental.pallas import tpu as pltpu


# ------------------------------ Pallas kernel --------------------------------

def tda_gcnet_kernel(x_ref, adj_ref, xtda_ref,
                     gw1_ref, gb1_ref, gw2_ref, gb2_ref,
                     gw3_ref, gb3_ref, gw4_ref, gb4_ref,
                     w1e_ref, fb1_ref, fw2_ref, fb2_ref, fw3_ref, fb3_ref,
                     wt1_ref, bt1_ref, wt2_ref, bt2_ref,
                     wl_ref, bl_ref,
                     out_ref, *, bt, n_nodes, n_fold):
    # x_ref:   (1, Bt*N, in_dim)         adj_ref: (1, Bt*N, Bt*N)  (block-diag)
    # xtda_ref:(1, Bt, tda_dim)          out_ref: (1, Bt, n_classes)
    x = x_ref[0]          # (Bt*N, in_dim)
    adj = adj_ref[0]      # (Bt*N, Bt*N)

    relu = lambda v: jnp.maximum(v, 0.0)
    dot = partial(jnp.dot, preferred_element_type=jnp.float32)

    # --- 4-layer GCN stack, Bt graphs at once via the block-diagonal adj ---
    h = relu(dot(adj, dot(x, gw1_ref[...])) + gb1_ref[...])
    h = relu(dot(adj, dot(h, gw2_ref[...])) + gb2_ref[...])
    h = relu(dot(adj, dot(h, gw3_ref[...])) + gb3_ref[...])
    x4 = relu(dot(adj, dot(h, gw4_ref[...])) + gb4_ref[...])   # (Bt*N, gcn_out)

    # --- fc1 on concat((x4,x4)) flattened & sliced to slice_ind, folded ---
    # fc1(xflat)_t == fc1_bias + sum_n x4[t, n, :] @ W1_eff[n]  (first n_fold
    # nodes only).  The leading-dim reshape is layout-free; each step below is
    # a Bt-row matmul (n_fold is a tiny static constant, typically 3).
    gcn_out = x4.shape[-1]
    x4_3d = x4.reshape(bt, n_nodes, gcn_out)                   # (Bt, N, gcn_out)
    acc = jnp.zeros((bt, fb1_ref.shape[-1]), jnp.float32)      # (Bt, 64)
    for n in range(n_fold):                                    # static unroll
        acc = acc + dot(x4_3d[:, n, :], w1e_ref[n])
    h = relu(acc + fb1_ref[...])                               # (Bt, 64)

    # --- TDA branch (all Bt elements at once) ---
    t = xtda_ref[0]                                            # (Bt, tda_dim)
    t = relu(dot(t, wt1_ref[...]) + bt1_ref[...])
    t = relu(dot(t, wt2_ref[...]) + bt2_ref[...])

    # --- MLP head ---
    h = h + t
    h = relu(dot(h, fw2_ref[...]) + fb2_ref[...])
    h = relu(dot(h, fw3_ref[...]) + fb3_ref[...])
    out_ref[0] = dot(h, wl_ref[...]) + bl_ref[...]             # (Bt, n_classes)


# --------------------------------- wrapper ------------------------------------

def fold_fc1_weight(w_fc1, gcn_out, slice_ind):
    """Fold concat((x4,x4),-1)/flatten/[:slice_ind] into the fc1 weight.

    Returns w_eff of shape (n_fold, gcn_out, fc1_out) such that
        xflat @ w_fc1 == sum_n x4[n, :] @ w_eff[n]
    where xflat = flatten(concat((x4, x4), axis=-1))[:slice_ind].
    """
    fc1_out = w_fc1.shape[1]
    per_row = 2 * gcn_out
    n_fold = -(-slice_ind // per_row)                 # ceil division
    pad = n_fold * per_row - slice_ind
    w_pad = jnp.concatenate(
        [w_fc1, jnp.zeros((pad, fc1_out), w_fc1.dtype)], axis=0)
    w_r = w_pad.reshape(n_fold, 2, gcn_out, fc1_out)  # (n, copy, c, out)
    return w_r.sum(axis=1)                            # fold the duplicate copy


def tda_gcnet_forward(x, x_tda, adj, gcn_params, mlp_params,
                      slice_ind=128, block_batch=None):
    B, N, in_dim = x.shape
    gw1, gb1, gw2, gb2, gw3, gb3, gw4, gb4 = gcn_params
    (fw1, fb1, fw2, fb2, fw3, fb3, wt1, bt1, wt2, bt2, wl, bl) = mlp_params
    gcn_out = gw4.shape[1]
    n_classes = wl.shape[1]
    tda_dim = x_tda.shape[-1]

    assert slice_ind <= N * 2 * gcn_out, "slice_ind exceeds flattened width"
    w1_eff = fold_fc1_weight(fw1, gcn_out, slice_ind)   # (n_fold, gcn_out, 64)
    n_fold = w1_eff.shape[0]
    assert n_fold <= N

    # Batch-block size: aim for Bt*N ~= 128 rows per MXU push.
    if block_batch is None:
        block_batch = max(1, min(B, max(1, 128 // N)))
    bt = int(block_batch)
    nb = -(-B // bt)                 # number of grid steps
    B_pad = nb * bt

    def pad_b(a):
        if B_pad == B:
            return a
        pad = jnp.zeros((B_pad - B,) + a.shape[1:], a.dtype)
        return jnp.concatenate([a, pad], axis=0)

    x_p = pad_b(x).reshape(nb, bt * N, in_dim)
    xtda_p = pad_b(x_tda).reshape(nb, bt, tda_dim)

    # Block-diagonal adjacency per super-block: (nb, Bt*N, Bt*N).
    adj_p = pad_b(adj).reshape(nb, bt, N, N)
    eye = jnp.eye(bt, dtype=adj.dtype)
    adj_bd = (adj_p[:, :, :, None, :] * eye[None, :, None, :, None]
              ).reshape(nb, bt * N, bt * N)

    # Weights/biases: whole array resident in VMEM, single copy (no pipelining).
    vmem_full = pl.BlockSpec(memory_space=pltpu.MemorySpace.VMEM)

    def batched(shape):  # one batch-block per grid step, trailing dims full
        return pl.BlockSpec((1,) + shape, lambda g: (g,) + (0,) * len(shape))

    out = pl.pallas_call(
        partial(tda_gcnet_kernel, bt=bt, n_nodes=N, n_fold=n_fold),
        out_shape=jax.ShapeDtypeStruct((nb, bt, n_classes), jnp.float32),
        grid=(nb,),
        in_specs=[
            batched((bt * N, in_dim)),     # x (flattened per block)
            batched((bt * N, bt * N)),     # block-diagonal adjacency
            batched((bt, tda_dim)),        # x_tda
        ] + [vmem_full] * 20,              # 8 GCN + 6 fc + 4 tda + 2 last params
        out_specs=batched((bt, n_classes)),
        compiler_params=pltpu.CompilerParams(
            dimension_semantics=("parallel",)),
    )(x_p, adj_bd, xtda_p,
      gw1, gb1, gw2, gb2, gw3, gb3, gw4, gb4,
      w1_eff, fb1, fw2, fb2, fw3, fb3, wt1, bt1, wt2, bt2, wl, bl)
    return out.reshape(B_pad, n_classes)[:B]


# --------------------------- parameter creation --------------------------------

def make_gcn_param(key, in_f, out_f):
    stdv = 1.0 / math.sqrt(out_f)
    kw, kb = jax.random.split(key)
    w = jax.random.uniform(kw, (in_f, out_f), jnp.float32, -stdv, stdv)
    b = jax.random.uniform(kb, (1, out_f), jnp.float32, -stdv, stdv)
    return w, b


def make_linear_param(key, in_f, out_f):
    bound = 1.0 / math.sqrt(in_f)
    kw, kb = jax.random.split(key)
    w = jax.random.uniform(kw, (in_f, out_f), jnp.float32, -bound, bound)
    b = jax.random.uniform(kb, (1, out_f), jnp.float32, -bound, bound)
    return w, b


# -------------------------------- reference ------------------------------------

def reference_forward(x, x_tda, adj, gcn_params, mlp_params, slice_ind=128):
    w1, b1, w2, b2, w3, b3, w4, b4 = gcn_params

    def gcn(h, w, b):
        return jax.nn.relu(jnp.einsum('bij,bjk->bik', adj, jnp.matmul(h, w)) + b)

    h1 = gcn(x, w1, b1)
    h2 = gcn(h1, w2, b2)
    h3 = gcn(h2, w3, b3)
    h4 = gcn(h3, w4, b4)
    xcat = jnp.concatenate((h4, h4), axis=2).reshape(x.shape[0], -1)[:, :slice_ind]

    (fw1, fb1, fw2, fb2, fw3, fb3, wt1, bt1, wt2, bt2, wl, bl) = mlp_params
    t = jax.nn.relu(x_tda @ wt1 + bt1)
    t = jax.nn.relu(t @ wt2 + bt2)
    h = jax.nn.relu(xcat @ fw1 + fb1) + t
    h = jax.nn.relu(h @ fw2 + fb2)
    h = jax.nn.relu(h @ fw3 + fb3)
    return h @ wl + bl


# ----------------------------------- main ---------------------------------------

if __name__ == "__main__":
    # Small shapes consistent with the module (concat=False, diag=False):
    B = 2
    N = 8             # adj_dim / graph nodes (N * 2 * gcn_out >= slice_ind)
    in_dim = 16
    tda_dim = 16
    n_classes = 4
    gcn_hidden = 64
    gcn_out = 30
    slice_ind = 128

    key = jax.random.PRNGKey(0)
    keys = jax.random.split(key, 16)

    # GCN parameters
    g1 = make_gcn_param(keys[0], in_dim, gcn_hidden)
    g2 = make_gcn_param(keys[1], gcn_hidden, gcn_hidden)
    g3 = make_gcn_param(keys[2], gcn_hidden, gcn_hidden)
    g4 = make_gcn_param(keys[3], gcn_hidden, gcn_out)
    gcn_params = (*g1, *g2, *g3, *g4)

    # MLP parameters
    fc1 = make_linear_param(keys[4], slice_ind, 64)
    fc2 = make_linear_param(keys[5], 64, 64)
    fc3 = make_linear_param(keys[6], 64, 64)
    fc1_tda = make_linear_param(keys[7], tda_dim, 32)
    fc2_tda = make_linear_param(keys[8], 32, 64)
    fc_last = make_linear_param(keys[9], 64, n_classes)
    mlp_params = (*fc1, *fc2, *fc3, *fc1_tda, *fc2_tda, *fc_last)

    # Inputs
    x = jax.random.normal(keys[10], (B, N, in_dim), jnp.float32)
    x_tda = jax.random.normal(keys[11], (B, tda_dim), jnp.float32)
    adj_raw = jax.random.uniform(keys[12], (B, N, N), jnp.float32)
    adj = 0.5 * (adj_raw + jnp.transpose(adj_raw, (0, 2, 1)))  # symmetric adjacency

    out = tda_gcnet_forward(x, x_tda, adj, gcn_params, mlp_params, slice_ind)
    out = jax.block_until_ready(out)

    ref = reference_forward(x, x_tda, adj, gcn_params, mlp_params, slice_ind)
    ref = jax.block_until_ready(ref)

    assert out.shape == (B, n_classes), out.shape
    assert jnp.allclose(out, ref, atol=1e-4, rtol=1e-4), (out, ref)

    print("KERNEL_OK")
</pallas_src>

<mosaic_0001>
module attributes {stable_mosaic.version = 11 : i64} {
  func.func @tda_gcnet_kernel(%arg0: i32, %arg1: memref<1x16x16xf32, #tpu.memory_space<vmem>>, %arg2: memref<1x16x16xf32, #tpu.memory_space<vmem>>, %arg3: memref<1x2x16xf32, #tpu.memory_space<vmem>>, %arg4: memref<16x64xf32, #tpu.memory_space<vmem>>, %arg5: memref<1x64xf32, #tpu.memory_space<vmem>>, %arg6: memref<64x64xf32, #tpu.memory_space<vmem>>, %arg7: memref<1x64xf32, #tpu.memory_space<vmem>>, %arg8: memref<64x64xf32, #tpu.memory_space<vmem>>, %arg9: memref<1x64xf32, #tpu.memory_space<vmem>>, %arg10: memref<64x30xf32, #tpu.memory_space<vmem>>, %arg11: memref<1x30xf32, #tpu.memory_space<vmem>>, %arg12: memref<3x30x64xf32, #tpu.memory_space<vmem>>, %arg13: memref<1x64xf32, #tpu.memory_space<vmem>>, %arg14: memref<64x64xf32, #tpu.memory_space<vmem>>, %arg15: memref<1x64xf32, #tpu.memory_space<vmem>>, %arg16: memref<64x64xf32, #tpu.memory_space<vmem>>, %arg17: memref<1x64xf32, #tpu.memory_space<vmem>>, %arg18: memref<16x32xf32, #tpu.memory_space<vmem>>, %arg19: memref<1x32xf32, #tpu.memory_space<vmem>>, %arg20: memref<32x64xf32, #tpu.memory_space<vmem>>, %arg21: memref<1x64xf32, #tpu.memory_space<vmem>>, %arg22: memref<64x4xf32, #tpu.memory_space<vmem>>, %arg23: memref<1x4xf32, #tpu.memory_space<vmem>>, %arg24: memref<1x2x4xf32, #tpu.memory_space<vmem>>) attributes {dimension_semantics = [#tpu.dimension_semantics<parallel>], iteration_bounds = array<i64: 1>, scalar_prefetch = 0 : i64, scratch_operands = 0 : i64, tpu.core_type = #tpu.core_type<tc>, window_params = [{transform_indices = @transform_0, window_bounds = array<i64: 1, 16, 16>}, {transform_indices = @transform_1, window_bounds = array<i64: 1, 16, 16>}, {transform_indices = @transform_2, window_bounds = array<i64: 1, 2, 16>}, {pipeline_mode = #tpu.pipeline_mode<synchronous>, transform_indices = @transform_3, window_bounds = array<i64: 16, 64>}, {pipeline_mode = #tpu.pipeline_mode<synchronous>, transform_indices = @transform_4, window_bounds = array<i64: 1, 64>}, {pipeline_mode = #tpu.pipeline_mode<synchronous>, transform_indices = @transform_5, window_bounds = array<i64: 64, 64>}, {pipeline_mode = #tpu.pipeline_mode<synchronous>, transform_indices = @transform_6, window_bounds = array<i64: 1, 64>}, {pipeline_mode = #tpu.pipeline_mode<synchronous>, transform_indices = @transform_7, window_bounds = array<i64: 64, 64>}, {pipeline_mode = #tpu.pipeline_mode<synchronous>, transform_indices = @transform_8, window_bounds = array<i64: 1, 64>}, {pipeline_mode = #tpu.pipeline_mode<synchronous>, transform_indices = @transform_9, window_bounds = array<i64: 64, 30>}, {pipeline_mode = #tpu.pipeline_mode<synchronous>, transform_indices = @transform_10, window_bounds = array<i64: 1, 30>}, {pipeline_mode = #tpu.pipeline_mode<synchronous>, transform_indices = @transform_11, window_bounds = array<i64: 3, 30, 64>}, {pipeline_mode = #tpu.pipeline_mode<synchronous>, transform_indices = @transform_12, window_bounds = array<i64: 1, 64>}, {pipeline_mode = #tpu.pipeline_mode<synchronous>, transform_indices = @transform_13, window_bounds = array<i64: 64, 64>}, {pipeline_mode = #tpu.pipeline_mode<synchronous>, transform_indices = @transform_14, window_bounds = array<i64: 1, 64>}, {pipeline_mode = #tpu.pipeline_mode<synchronous>, transform_indices = @transform_15, window_bounds = array<i64: 64, 64>}, {pipeline_mode = #tpu.pipeline_mode<synchronous>, transform_indices = @transform_16, window_bounds = array<i64: 1, 64>}, {pipeline_mode = #tpu.pipeline_mode<synchronous>, transform_indices = @transform_17, window_bounds = array<i64: 16, 32>}, {pipeline_mode = #tpu.pipeline_mode<synchronous>, transform_indices = @transform_18, window_bounds = array<i64: 1, 32>}, {pipeline_mode = #tpu.pipeline_mode<synchronous>, transform_indices = @transform_19, window_bounds = array<i64: 32, 64>}, {pipeline_mode = #tpu.pipeline_mode<synchronous>, transform_indices = @transform_20, window_bounds = array<i64: 1, 64>}, {pipeline_mode = #tpu.pipeline_mode<synchronous>, transform_indices = @transform_21, window_bounds = array<i64: 64, 4>}, {pipeline_mode = #tpu.pipeline_mode<synchronous>, transform_indices = @transform_22, window_bounds = array<i64: 1, 4>}, {transform_indices = @transform_23, window_bounds = array<i64: 1, 2, 4>}]} {
    %c0 = arith.constant 0 : index
    %c0_0 = arith.constant 0 : index
    %c0_1 = arith.constant 0 : index
    %0 = vector.load %arg1[%c0, %c0_0, %c0_1] : memref<1x16x16xf32, #tpu.memory_space<vmem>>, vector<1x16x16xf32>
    %1 = vector.shape_cast %0 : vector<1x16x16xf32> to vector<16x16xf32>
    %c0_2 = arith.constant 0 : index
    %c0_3 = arith.constant 0 : index
    %c0_4 = arith.constant 0 : index
    %2 = vector.load %arg2[%c0_2, %c0_3, %c0_4] : memref<1x16x16xf32, #tpu.memory_space<vmem>>, vector<1x16x16xf32>
    %3 = vector.shape_cast %2 : vector<1x16x16xf32> to vector<16x16xf32>
    %c0_5 = arith.constant 0 : index
    %c0_6 = arith.constant 0 : index
    %4 = vector.load %arg4[%c0_5, %c0_6] : memref<16x64xf32, #tpu.memory_space<vmem>>, vector<16x64xf32>
    %cst = arith.constant dense<0.000000e+00> : vector<16x64xf32>
    %5 = tpu.matmul %1, %4, %cst {dimension_numbers = #tpu.dot_dimension_numbers<[1], [0], [0], [1], [0, 0, 1, 1], [], []>} : vector<16x16xf32>, vector<16x64xf32>, vector<16x64xf32> -> vector<16x64xf32>
    %cst_7 = arith.constant dense<0.000000e+00> : vector<16x64xf32>
    %6 = tpu.matmul %3, %5, %cst_7 {dimension_numbers = #tpu.dot_dimension_numbers<[1], [0], [0], [1], [0, 0, 1, 1], [], []>} : vector<16x16xf32>, vector<16x64xf32>, vector<16x64xf32> -> vector<16x64xf32>
    %c0_8 = arith.constant 0 : index
    %c0_9 = arith.constant 0 : index
    %7 = vector.load %arg5[%c0_8, %c0_9] : memref<1x64xf32, #tpu.memory_space<vmem>>, vector<1x64xf32>
    %8 = vector.broadcast %7 : vector<1x64xf32> to vector<16x64xf32>
    %9 = arith.addf %6, %8 : vector<16x64xf32>
    %cst_10 = arith.constant 0.000000e+00 : f32
    %10 = vector.broadcast %cst_10 : f32 to vector<16x64xf32>
    %11 = arith.maximumf %9, %10 : vector<16x64xf32>
    %c0_11 = arith.constant 0 : index
    %c0_12 = arith.constant 0 : index
    %12 = vector.load %arg6[%c0_11, %c0_12] : memref<64x64xf32, #tpu.memory_space<vmem>>, vector<64x64xf32>
    %cst_13 = arith.constant dense<0.000000e+00> : vector<16x64xf32>
    %13 = tpu.matmul %11, %12, %cst_13 {dimension_numbers = #tpu.dot_dimension_numbers<[1], [0], [0], [1], [0, 0, 1, 1], [], []>} : vector<16x64xf32>, vector<64x64xf32>, vector<16x64xf32> -> vector<16x64xf32>
    %cst_14 = arith.constant dense<0.000000e+00> : vector<16x64xf32>
    %14 = tpu.matmul %3, %13, %cst_14 {dimension_numbers = #tpu.dot_dimension_numbers<[1], [0], [0], [1], [0, 0, 1, 1], [], []>} : vector<16x16xf32>, vector<16x64xf32>, vector<16x64xf32> -> vector<16x64xf32>
    %c0_15 = arith.constant 0 : index
    %c0_16 = arith.constant 0 : index
    %15 = vector.load %arg7[%c0_15, %c0_16] : memref<1x64xf32, #tpu.memory_space<vmem>>, vector<1x64xf32>
    %16 = vector.broadcast %15 : vector<1x64xf32> to vector<16x64xf32>
    %17 = arith.addf %14, %16 : vector<16x64xf32>
    %cst_17 = arith.constant 0.000000e+00 : f32
    %18 = vector.broadcast %cst_17 : f32 to vector<16x64xf32>
    %19 = arith.maximumf %17, %18 : vector<16x64xf32>
    %c0_18 = arith.constant 0 : index
    %c0_19 = arith.constant 0 : index
    %20 = vector.load %arg8[%c0_18, %c0_19] : memref<64x64xf32, #tpu.memory_space<vmem>>, vector<64x64xf32>
    %cst_20 = arith.constant dense<0.000000e+00> : vector<16x64xf32>
    %21 = tpu.matmul %19, %20, %cst_20 {dimension_numbers = #tpu.dot_dimension_numbers<[1], [0], [0], [1], [0, 0, 1, 1], [], []>} : vector<16x64xf32>, vector<64x64xf32>, vector<16x64xf32> -> vector<16x64xf32>
    %cst_21 = arith.constant dense<0.000000e+00> : vector<16x64xf32>
    %22 = tpu.matmul %3, %21, %cst_21 {dimension_numbers = #tpu.dot_dimension_numbers<[1], [0], [0], [1], [0, 0, 1, 1], [], []>} : vector<16x16xf32>, vector<16x64xf32>, vector<16x64xf32> -> vector<16x64xf32>
    %c0_22 = arith.constant 0 : index
    %c0_23 = arith.constant 0 : index
    %23 = vector.load %arg9[%c0_22, %c0_23] : memref<1x64xf32, #tpu.memory_space<vmem>>, vector<1x64xf32>
    %24 = vector.broadcast %23 : vector<1x64xf32> to vector<16x64xf32>
    %25 = arith.addf %22, %24 : vector<16x64xf32>
    %cst_24 = arith.constant 0.000000e+00 : f32
    %26 = vector.broadcast %cst_24 : f32 to vector<16x64xf32>
    %27 = arith.maximumf %25, %26 : vector<16x64xf32>
    %c0_25 = arith.constant 0 : index
    %c0_26 = arith.constant 0 : index
    %28 = vector.load %arg10[%c0_25, %c0_26] : memref<64x30xf32, #tpu.memory_space<vmem>>, vector<64x30xf32>
    %cst_27 = arith.constant dense<0.000000e+00> : vector<16x30xf32>
    %29 = tpu.matmul %27, %28, %cst_27 {dimension_numbers = #tpu.dot_dimension_numbers<[1], [0], [0], [1], [0, 0, 1, 1], [], []>} : vector<16x64xf32>, vector<64x30xf32>, vector<16x30xf32> -> vector<16x30xf32>
    %cst_28 = arith.constant dense<0.000000e+00> : vector<16x30xf32>
    %30 = tpu.matmul %3, %29, %cst_28 {dimension_numbers = #tpu.dot_dimension_numbers<[1], [0], [0], [1], [0, 0, 1, 1], [], []>} : vector<16x16xf32>, vector<16x30xf32>, vector<16x30xf32> -> vector<16x30xf32>
    %c0_29 = arith.constant 0 : index
    %c0_30 = arith.constant 0 : index
    %31 = vector.load %arg11[%c0_29, %c0_30] : memref<1x30xf32, #tpu.memory_space<vmem>>, vector<1x30xf32>
    %32 = vector.broadcast %31 : vector<1x30xf32> to vector<16x30xf32>
    %33 = arith.addf %30, %32 : vector<16x30xf32>
    %cst_31 = arith.constant 0.000000e+00 : f32
    %34 = vector.broadcast %cst_31 : f32 to vector<16x30xf32>
    %35 = arith.maximumf %33, %34 : vector<16x30xf32>
    %36 = vector.shape_cast %35 : vector<16x30xf32> to vector<2x8x30xf32>
    %cst_32 = arith.constant 0.000000e+00 : f32
    %37 = vector.broadcast %cst_32 : f32 to vector<2x64xf32>
    %38 = vector.extract_strided_slice %36 {offsets = [0, 0, 0], sizes = [2, 1, 30], strides = [1, 1, 1]} : vector<2x8x30xf32> to vector<2x1x30xf32>
    %39 = vector.shape_cast %38 : vector<2x1x30xf32> to vector<2x30xf32>
    %c0_33 = arith.constant 0 : index
    %c0_34 = arith.constant 0 : index
    %c0_35 = arith.constant 0 : index
    %40 = vector.load %arg12[%c0_33, %c0_34, %c0_35] : memref<3x30x64xf32, #tpu.memory_space<vmem>>, vector<1x30x64xf32>
    %41 = vector.shape_cast %40 : vector<1x30x64xf32> to vector<30x64xf32>
    %cst_36 = arith.constant dense<0.000000e+00> : vector<2x64xf32>
    %42 = tpu.matmul %39, %41, %cst_36 {dimension_numbers = #tpu.dot_dimension_numbers<[1], [0], [0], [1], [0, 0, 1, 1], [], []>} : vector<2x30xf32>, vector<30x64xf32>, vector<2x64xf32> -> vector<2x64xf32>
    %43 = arith.addf %37, %42 : vector<2x64xf32>
    %44 = vector.extract_strided_slice %36 {offsets = [0, 1, 0], sizes = [2, 1, 30], strides = [1, 1, 1]} : vector<2x8x30xf32> to vector<2x1x30xf32>
    %45 = vector.shape_cast %44 : vector<2x1x30xf32> to vector<2x30xf32>
    %c1 = arith.constant 1 : index
    %c0_37 = arith.constant 0 : index
    %c0_38 = arith.constant 0 : index
    %46 = vector.load %arg12[%c1, %c0_37, %c0_38] : memref<3x30x64xf32, #tpu.memory_space<vmem>>, vector<1x30x64xf32>
    %47 = vector.shape_cast %46 : vector<1x30x64xf32> to vector<30x64xf32>
    %cst_39 = arith.constant dense<0.000000e+00> : vector<2x64xf32>
    %48 = tpu.matmul %45, %47, %cst_39 {dimension_numbers = #tpu.dot_dimension_numbers<[1], [0], [0], [1], [0, 0, 1, 1], [], []>} : vector<2x30xf32>, vector<30x64xf32>, vector<2x64xf32> -> vector<2x64xf32>
    %49 = arith.addf %43, %48 : vector<2x64xf32>
    %50 = vector.extract_strided_slice %36 {offsets = [0, 2, 0], sizes = [2, 1, 30], strides = [1, 1, 1]} : vector<2x8x30xf32> to vector<2x1x30xf32>
    %51 = vector.shape_cast %50 : vector<2x1x30xf32> to vector<2x30xf32>
    %c2 = arith.constant 2 : index
    %c0_40 = arith.constant 0 : index
    %c0_41 = arith.constant 0 : index
    %52 = vector.load %arg12[%c2, %c0_40, %c0_41] : memref<3x30x64xf32, #tpu.memory_space<vmem>>, vector<1x30x64xf32>
    %53 = vector.shape_cast %52 : vector<1x30x64xf32> to vector<30x64xf32>
    %cst_42 = arith.constant dense<0.000000e+00> : vector<2x64xf32>
    %54 = tpu.matmul %51, %53, %cst_42 {dimension_numbers = #tpu.dot_dimension_numbers<[1], [0], [0], [1], [0, 0, 1, 1], [], []>} : vector<2x30xf32>, vector<30x64xf32>, vector<2x64xf32> -> vector<2x64xf32>
    %55 = arith.addf %49, %54 : vector<2x64xf32>
    %c0_43 = arith.constant 0 : index
    %c0_44 = arith.constant 0 : index
    %56 = vector.load %arg13[%c0_43, %c0_44] : memref<1x64xf32, #tpu.memory_space<vmem>>, vector<1x64xf32>
    %57 = vector.broadcast %56 : vector<1x64xf32> to vector<2x64xf32>
    %58 = arith.addf %55, %57 : vector<2x64xf32>
    %cst_45 = arith.constant 0.000000e+00 : f32
    %59 = vector.broadcast %cst_45 : f32 to vector<2x64xf32>
    %60 = arith.maximumf %58, %59 : vector<2x64xf32>
    %c0_46 = arith.constant 0 : index
    %c0_47 = arith.constant 0 : index
    %c0_48 = arith.constant 0 : index
    %61 = vector.load %arg3[%c0_46, %c0_47, %c0_48] : memref<1x2x16xf32, #tpu.memory_space<vmem>>, vector<1x2x16xf32>
    %62 = vector.shape_cast %61 : vector<1x2x16xf32> to vector<2x16xf32>
    %c0_49 = arith.constant 0 : index
    %c0_50 = arith.constant 0 : index
    %63 = vector.load %arg18[%c0_49, %c0_50] : memref<16x32xf32, #tpu.memory_space<vmem>>, vector<16x32xf32>
    %cst_51 = arith.constant dense<0.000000e+00> : vector<2x32xf32>
    %64 = tpu.matmul %62, %63, %cst_51 {dimension_numbers = #tpu.dot_dimension_numbers<[1], [0], [0], [1], [0, 0, 1, 1], [], []>} : vector<2x16xf32>, vector<16x32xf32>, vector<2x32xf32> -> vector<2x32xf32>
    %c0_52 = arith.constant 0 : index
    %c0_53 = arith.constant 0 : index
    %65 = vector.load %arg19[%c0_52, %c0_53] : memref<1x32xf32, #tpu.memory_space<vmem>>, vector<1x32xf32>
    %66 = vector.broadcast %65 : vector<1x32xf32> to vector<2x32xf32>
    %67 = arith.addf %64, %66 : vector<2x32xf32>
    %cst_54 = arith.constant 0.000000e+00 : f32
    %68 = vector.broadcast %cst_54 : f32 to vector<2x32xf32>
    %69 = arith.maximumf %67, %68 : vector<2x32xf32>
    %c0_55 = arith.constant 0 : index
    %c0_56 = arith.constant 0 : index
    %70 = vector.load %arg20[%c0_55, %c0_56] : memref<32x64xf32, #tpu.memory_space<vmem>>, vector<32x64xf32>
    %cst_57 = arith.constant dense<0.000000e+00> : vector<2x64xf32>
    %71 = tpu.matmul %69, %70, %cst_57 {dimension_numbers = #tpu.dot_dimension_numbers<[1], [0], [0], [1], [0, 0, 1, 1], [], []>} : vector<2x32xf32>, vector<32x64xf32>, vector<2x64xf32> -> vector<2x64xf32>
    %c0_58 = arith.constant 0 : index
    %c0_59 = arith.constant 0 : index
    %72 = vector.load %arg21[%c0_58, %c0_59] : memref<1x64xf32, #tpu.memory_space<vmem>>, vector<1x64xf32>
    %73 = vector.broadcast %72 : vector<1x64xf32> to vector<2x64xf32>
    %74 = arith.addf %71, %73 : vector<2x64xf32>
    %cst_60 = arith.constant 0.000000e+00 : f32
    %75 = vector.broadcast %cst_60 : f32 to vector<2x64xf32>
    %76 = arith.maximumf %74, %75 : vector<2x64xf32>
    %77 = arith.addf %60, %76 : vector<2x64xf32>
    %c0_61 = arith.constant 0 : index
    %c0_62 = arith.constant 0 : index
    %78 = vector.load %arg14[%c0_61, %c0_62] : memref<64x64xf32, #tpu.memory_space<vmem>>, vector<64x64xf32>
    %cst_63 = arith.constant dense<0.000000e+00> : vector<2x64xf32>
    %79 = tpu.matmul %77, %78, %cst_63 {dimension_numbers = #tpu.dot_dimension_numbers<[1], [0], [0], [1], [0, 0, 1, 1], [], []>} : vector<2x64xf32>, vector<64x64xf32>, vector<2x64xf32> -> vector<2x64xf32>
    %c0_64 = arith.constant 0 : index
    %c0_65 = arith.constant 0 : index
    %80 = vector.load %arg15[%c0_64, %c0_65] : memref<1x64xf32, #tpu.memory_space<vmem>>, vector<1x64xf32>
    %81 = vector.broadcast %80 : vector<1x64xf32> to vector<2x64xf32>
    %82 = arith.addf %79, %81 : vector<2x64xf32>
    %cst_66 = arith.constant 0.000000e+00 : f32
    %83 = vector.broadcast %cst_66 : f32 to vector<2x64xf32>
    %84 = arith.maximumf %82, %83 : vector<2x64xf32>
    %c0_67 = arith.constant 0 : index
    %c0_68 = arith.constant 0 : index
    %85 = vector.load %arg16[%c0_67, %c0_68] : memref<64x64xf32, #tpu.memory_space<vmem>>, vector<64x64xf32>
    %cst_69 = arith.constant dense<0.000000e+00> : vector<2x64xf32>
    %86 = tpu.matmul %84, %85, %cst_69 {dimension_numbers = #tpu.dot_dimension_numbers<[1], [0], [0], [1], [0, 0, 1, 1], [], []>} : vector<2x64xf32>, vector<64x64xf32>, vector<2x64xf32> -> vector<2x64xf32>
    %c0_70 = arith.constant 0 : index
    %c0_71 = arith.constant 0 : index
    %87 = vector.load %arg17[%c0_70, %c0_71] : memref<1x64xf32, #tpu.memory_space<vmem>>, vector<1x64xf32>
    %88 = vector.broadcast %87 : vector<1x64xf32> to vector<2x64xf32>
    %89 = arith.addf %86, %88 : vector<2x64xf32>
    %cst_72 = arith.constant 0.000000e+00 : f32
    %90 = vector.broadcast %cst_72 : f32 to vector<2x64xf32>
    %91 = arith.maximumf %89, %90 : vector<2x64xf32>
    %c0_73 = arith.constant 0 : index
    %c0_74 = arith.constant 0 : index
    %92 = vector.load %arg22[%c0_73, %c0_74] : memref<64x4xf32, #tpu.memory_space<vmem>>, vector<64x4xf32>
    %cst_75 = arith.constant dense<0.000000e+00> : vector<2x4xf32>
    %93 = tpu.matmul %91, %92, %cst_75 {dimension_numbers = #tpu.dot_dimension_numbers<[1], [0], [0], [1], [0, 0, 1, 1], [], []>} : vector<2x64xf32>, vector<64x4xf32>, vector<2x4xf32> -> vector<2x4xf32>
    %c0_76 = arith.constant 0 : index
    %c0_77 = arith.constant 0 : index
    %94 = vector.load %arg23[%c0_76, %c0_77] : memref<1x4xf32, #tpu.memory_space<vmem>>, vector<1x4xf32>
    %95 = vector.broadcast %94 : vector<1x4xf32> to vector<2x4xf32>
    %96 = arith.addf %93, %95 : vector<2x4xf32>
    %c0_78 = arith.constant 0 : index
    %c0_79 = arith.constant 0 : index
    %c0_80 = arith.constant 0 : index
    %97 = vector.load %arg24[%c0_78, %c0_79, %c0_80] : memref<1x2x4xf32, #tpu.memory_space<vmem>>, vector<1x2x4xf32>
    %98 = vector.shape_cast %97 : vector<1x2x4xf32> to vector<2x4xf32>
    %99 = vector.shape_cast %96 : vector<2x4xf32> to vector<1x2x4xf32>
    tpu.vector_store %arg24[%c0_78, %c0_79, %c0_80], %99 {strides = array<i32>} : memref<1x2x4xf32, #tpu.memory_space<vmem>>, vector<1x2x4xf32>,
    return
  }
  func.func @transform_0(%arg0: i32) -> (i32, i32, i32) {
    %c0_i32 = arith.constant 0 : i32
    %c0_i32_0 = arith.constant 0 : i32
    %c0_i32_1 = arith.constant 0 : i32
    return %arg0, %c0_i32, %c0_i32_0 : i32, i32, i32
  }
  func.func @transform_1(%arg0: i32) -> (i32, i32, i32) {
    %c0_i32 = arith.constant 0 : i32
    %c0_i32_0 = arith.constant 0 : i32
    %c0_i32_1 = arith.constant 0 : i32
    return %arg0, %c0_i32, %c0_i32_0 : i32, i32, i32
  }
  func.func @transform_2(%arg0: i32) -> (i32, i32, i32) {
    %c0_i32 = arith.constant 0 : i32
    %c0_i32_0 = arith.constant 0 : i32
    %c0_i32_1 = arith.constant 0 : i32
    return %arg0, %c0_i32, %c0_i32_0 : i32, i32, i32
  }
  func.func @transform_3(%arg0: i32) -> (i32, i32) {
    %c0_i32 = arith.constant 0 : i32
    %c0_i32_0 = arith.constant 0 : i32
    %c0_i32_1 = arith.constant 0 : i32
    return %c0_i32, %c0_i32_0 : i32, i32
  }
  func.func @transform_4(%arg0: i32) -> (i32, i32) {
    %c0_i32 = arith.constant 0 : i32
    %c0_i32_0 = arith.constant 0 : i32
    %c0_i32_1 = arith.constant 0 : i32
    return %c0_i32, %c0_i32_0 : i32, i32
  }
  func.func @transform_5(%arg0: i32) -> (i32, i32) {
    %c0_i32 = arith.constant 0 : i32
    %c0_i32_0 = arith.constant 0 : i32
    %c0_i32_1 = arith.constant 0 : i32
    return %c0_i32, %c0_i32_0 : i32, i32
  }
  func.func @transform_6(%arg0: i32) -> (i32, i32) {
    %c0_i32 = arith.constant 0 : i32
    %c0_i32_0 = arith.constant 0 : i32
    %c0_i32_1 = arith.constant 0 : i32
    return %c0_i32, %c0_i32_0 : i32, i32
  }
  func.func @transform_7(%arg0: i32) -> (i32, i32) {
    %c0_i32 = arith.constant 0 : i32
    %c0_i32_0 = arith.constant 0 : i32
    %c0_i32_1 = arith.constant 0 : i32
    return %c0_i32, %c0_i32_0 : i32, i32
  }
  func.func @transform_8(%arg0: i32) -> (i32, i32) {
    %c0_i32 = arith.constant 0 : i32
    %c0_i32_0 = arith.constant 0 : i32
    %c0_i32_1 = arith.constant 0 : i32
    return %c0_i32, %c0_i32_0 : i32, i32
  }
  func.func @transform_9(%arg0: i32) -> (i32, i32) {
    %c0_i32 = arith.constant 0 : i32
    %c0_i32_0 = arith.constant 0 : i32
    %c0_i32_1 = arith.constant 0 : i32
    return %c0_i32, %c0_i32_0 : i32, i32
  }
  func.func @transform_10(%arg0: i32) -> (i32, i32) {
    %c0_i32 = arith.constant 0 : i32
    %c0_i32_0 = arith.constant 0 : i32
    %c0_i32_1 = arith.constant 0 : i32
    return %c0_i32, %c0_i32_0 : i32, i32
  }
  func.func @transform_11(%arg0: i32) -> (i32, i32, i32) {
    %c0_i32 = arith.constant 0 : i32
    %c0_i32_0 = arith.constant 0 : i32
    %c0_i32_1 = arith.constant 0 : i32
    %c0_i32_2 = arith.constant 0 : i32
    return %c0_i32, %c0_i32_0, %c0_i32_1 : i32, i32, i32
  }
  func.func @transform_12(%arg0: i32) -> (i32, i32) {
    %c0_i32 = arith.constant 0 : i32
    %c0_i32_0 = arith.constant 0 : i32
    %c0_i32_1 = arith.constant 0 : i32
    return %c0_i32, %c0_i32_0 : i32, i32
  }
  func.func @transform_13(%arg0: i32) -> (i32, i32) {
    %c0_i32 = arith.constant 0 : i32
    %c0_i32_0 = arith.constant 0 : i32
    %c0_i32_1 = arith.constant 0 : i32
    return %c0_i32, %c0_i32_0 : i32, i32
  }
  func.func @transform_14(%arg0: i32) -> (i32, i32) {
    %c0_i32 = arith.constant 0 : i32
    %c0_i32_0 = arith.constant 0 : i32
    %c0_i32_1 = arith.constant 0 : i32
    return %c0_i32, %c0_i32_0 : i32, i32
  }
  func.func @transform_15(%arg0: i32) -> (i32, i32) {
    %c0_i32 = arith.constant 0 : i32
    %c0_i32_0 = arith.constant 0 : i32
    %c0_i32_1 = arith.constant 0 : i32
    return %c0_i32, %c0_i32_0 : i32, i32
  }
  func.func @transform_16(%arg0: i32) -> (i32, i32) {
    %c0_i32 = arith.constant 0 : i32
    %c0_i32_0 = arith.constant 0 : i32
    %c0_i32_1 = arith.constant 0 : i32
    return %c0_i32, %c0_i32_0 : i32, i32
  }
  func.func @transform_17(%arg0: i32) -> (i32, i32) {
    %c0_i32 = arith.constant 0 : i32
    %c0_i32_0 = arith.constant 0 : i32
    %c0_i32_1 = arith.constant 0 : i32
    return %c0_i32, %c0_i32_0 : i32, i32
  }
  func.func @transform_18(%arg0: i32) -> (i32, i32) {
    %c0_i32 = arith.constant 0 : i32
    %c0_i32_0 = arith.constant 0 : i32
    %c0_i32_1 = arith.constant 0 : i32
    return %c0_i32, %c0_i32_0 : i32, i32
  }
  func.func @transform_19(%arg0: i32) -> (i32, i32) {
    %c0_i32 = arith.constant 0 : i32
    %c0_i32_0 = arith.constant 0 : i32
    %c0_i32_1 = arith.constant 0 : i32
    return %c0_i32, %c0_i32_0 : i32, i32
  }
  func.func @transform_20(%arg0: i32) -> (i32, i32) {
    %c0_i32 = arith.constant 0 : i32
    %c0_i32_0 = arith.constant 0 : i32
    %c0_i32_1 = arith.constant 0 : i32
    return %c0_i32, %c0_i32_0 : i32, i32
  }
  func.func @transform_21(%arg0: i32) -> (i32, i32) {
    %c0_i32 = arith.constant 0 : i32
    %c0_i32_0 = arith.constant 0 : i32
    %c0_i32_1 = arith.constant 0 : i32
    return %c0_i32, %c0_i32_0 : i32, i32
  }
  func.func @transform_22(%arg0: i32) -> (i32, i32) {
    %c0_i32 = arith.constant 0 : i32
    %c0_i32_0 = arith.constant 0 : i32
    %c0_i32_1 = arith.constant 0 : i32
    return %c0_i32, %c0_i32_0 : i32, i32
  }
  func.func @transform_23(%arg0: i32) -> (i32, i32, i32) {
    %c0_i32 = arith.constant 0 : i32
    %c0_i32_0 = arith.constant 0 : i32
    %c0_i32_1 = arith.constant 0 : i32
    return %arg0, %c0_i32, %c0_i32_0 : i32, i32, i32
  }
}

</mosaic_0001>

<llo_original>
// kernel: tpu_custom_call.1
$region0: #{tpu_custom_call.1}
  #allocation0 [shape = 'u32[]', space=smem, size = 0x4, offset = 0x4, fixed_abs, tag = 'smem constant byte address 0x4 - core index']
  #allocation1 [shape = 'u32[72,128]{1,0:T(1,128)}', space=vmem, size = 0x9000, scoped, tag = 'internal scratch']
  %s0 = inlined_call_operand.hbm [shape: f32[1,16,16], index: 0, kind: input, shape index: {}]
  %s1 = inlined_call_operand.hbm [shape: f32[1,16,16], index: 1, kind: input, shape index: {}]
  %s2 = inlined_call_operand.vmem [shape: f32[1,2,16], index: 2, kind: input, shape index: {}]
  %s3 = inlined_call_operand.hbm [shape: f32[16,64], index: 3, kind: input, shape index: {}]
  %s4 = inlined_call_operand.vmem [shape: f32[1,64], index: 4, kind: input, shape index: {}]
  %s5 = inlined_call_operand.vmem [shape: f32[64,64], index: 5, kind: input, shape index: {}]
  %s6 = inlined_call_operand.vmem [shape: f32[1,64], index: 6, kind: input, shape index: {}]
  %s7 = inlined_call_operand.hbm [shape: f32[64,64], index: 7, kind: input, shape index: {}]
  %s8 = inlined_call_operand.vmem [shape: f32[1,64], index: 8, kind: input, shape index: {}]
  %s9 = inlined_call_operand.vmem [shape: f32[64,30], index: 9, kind: input, shape index: {}]
  %s10 = inlined_call_operand.vmem [shape: f32[1,30], index: 10, kind: input, shape index: {}]
  %s11 = inlined_call_operand.vmem [shape: f32[3,30,64], index: 11, kind: input, shape index: {}]
  %s12 = inlined_call_operand.vmem [shape: f32[1,64], index: 12, kind: input, shape index: {}]
  %s13 = inlined_call_operand.hbm [shape: f32[64,64], index: 13, kind: input, shape index: {}]
  %s14 = inlined_call_operand.vmem [shape: f32[1,64], index: 14, kind: input, shape index: {}]
  %s15 = inlined_call_operand.hbm [shape: f32[64,64], index: 15, kind: input, shape index: {}]
  %s16 = inlined_call_operand.vmem [shape: f32[1,64], index: 16, kind: input, shape index: {}]
  %s17 = inlined_call_operand.hbm [shape: f32[16,32], index: 17, kind: input, shape index: {}]
  %s18 = inlined_call_operand.vmem [shape: f32[1,32], index: 18, kind: input, shape index: {}]
  %s19 = inlined_call_operand.hbm [shape: f32[32,64], index: 19, kind: input, shape index: {}]
  %s20 = inlined_call_operand.vmem [shape: f32[1,64], index: 20, kind: input, shape index: {}]
  %s21 = inlined_call_operand.vmem [shape: f32[64,4], index: 21, kind: input, shape index: {}]
  %s22 = inlined_call_operand.vmem [shape: f32[1,4], index: 22, kind: input, shape index: {}]
  %s23 = inlined_call_operand.hbm [shape: f32[1,2,4], index: 23, kind: output, shape index: {}]
  %s24 = sld [smem:[#allocation0]]
  $region134: #{tpu_custom_call.1} parent=0
    _
  %s26 = ssub.s32 1, %s24
  %s27 = scalar_select 0, %s26, %s24
  $region1: #{tpu_custom_call.1} parent=0
    #allocation2 [shape = 'u8[8192]{0}', space=vmem, size = 0x2000, scoped, tag = 'input window, operand 0, single buffered']
    #allocation3 [shape = 's32[1]{0}', space=sflag, size = 0x4, scoped, tag = 'scoped memory for tpu_custom_call.1']
    #allocation4 [shape = 's32[1]{0}', space=sflag, size = 0x4, scoped, tag = 'scoped memory for tpu_custom_call.1']
    #allocation5 [shape = 'u8[8192]{0}', space=vmem, size = 0x2000, scoped, tag = 'input window, operand 1, single buffered']
    #allocation6 [shape = 's32[1]{0}', space=sflag, size = 0x4, scoped, tag = 'scoped memory for tpu_custom_call.1']
    #allocation7 [shape = 'u8[8192]{0}', space=vmem, size = 0x2000, scoped, tag = 'input window, operand 3, single buffered']
    #allocation8 [shape = 'u8[32768]{0}', space=vmem, size = 0x8000, scoped, tag = 'input window, operand 7, single buffered']
    #allocation9 [shape = 's32[1]{0}', space=sflag, size = 0x4, scoped, tag = 'scoped memory for tpu_custom_call.1']
    #allocation10 [shape = 'u8[32768]{0}', space=vmem, size = 0x8000, scoped, tag = 'input window, operand 13, single buffered']
    #allocation11 [shape = 'u8[32768]{0}', space=vmem, size = 0x8000, scoped, tag = 'input window, operand 15, single buffered']
    #allocation12 [shape = 's32[1]{0}', space=sflag, size = 0x4, scoped, tag = 'scoped memory for tpu_custom_call.1']
    #allocation13 [shape = 'u8[8192]{0}', space=vmem, size = 0x2000, scoped, tag = 'input window, operand 17, single buffered']
    #allocation14 [shape = 'u8[16384]{0}', space=vmem, size = 0x4000, scoped, tag = 'input window, operand 19, single buffered']
    #allocation15 [shape = 's32[1]{0}', space=sflag, size = 0x4, scoped, tag = 'scoped memory for tpu_custom_call.1']
    #allocation16 [shape = 'u8[1024]{0}', space=vmem, size = 0x400, scoped, tag = 'output window, operand 0, single buffered']
    %28 = vsyncpa [#allocation3], 0
    %29 = vsyncpa [#allocation6], 0
    %30 = vsyncpa [#allocation9], 0
    %31 = vsyncpa [#allocation12], 0
    %32 = vsyncpa [#allocation15], 0
    %33 = vsyncpa [#allocation4], 0
    // Predicated region
    $region2: #{tpu_custom_call.1} parent=1 // pred_check
      _
    $region3: #{tpu_custom_call.1} parent=1 // pred_check_branch
      %35 = sbr.rel (0) target = $region5
    $region4: #{tpu_custom_call.1} parent=1 // pred_region
      %37 = vsyncadd [#allocation3], 0
      %s38 = sshll.u32 %s0, 4
      %s39 = int_to_ptr.hbm [resolvable:$true] %s38
      %s40 = sshll.u32 [#allocation2], 4
      %s41 = int_to_ptr.vmem [resolvable:$true] %s40
      %46 = dma.hbm_to_vmem [thread:$0]  %s39, 256, %s41, [#allocation3], 128, 128, 8
    $region5: #{tpu_custom_call.1} parent=1 // pred_fallthru
      _
    // Predicated region
    $region6: #{tpu_custom_call.1} parent=1 // pred_check
      _
    $region7: #{tpu_custom_call.1} parent=1 // pred_check_branch
      %48 = sbr.rel (0) target = $region9
    $region8: #{tpu_custom_call.1} parent=1 // pred_region
      %50 = vsyncadd [#allocation6], 0
      %s51 = sshll.u32 %s1, 4
      %s52 = int_to_ptr.hbm [resolvable:$true] %s51
      %s53 = sshll.u32 [#allocation5], 4
      %s54 = int_to_ptr.vmem [resolvable:$true] %s53
      %59 = dma.hbm_to_vmem [thread:$0]  %s52, 256, %s54, [#allocation6], 128, 128, 8
    $region9: #{tpu_custom_call.1} parent=1 // pred_fallthru
      _
    // Predicated region
    $region10: #{tpu_custom_call.1} parent=1 // pred_check
      _
    $region11: #{tpu_custom_call.1} parent=1 // pred_check_branch
      %61 = sbr.rel (0) target = $region13
    $region12: #{tpu_custom_call.1} parent=1 // pred_region
      _
    $region13: #{tpu_custom_call.1} parent=1 // pred_fallthru
      _
    // Predicated region
    $region14: #{tpu_custom_call.1} parent=1 // pred_check
      _
    $region15: #{tpu_custom_call.1} parent=1 // pred_check_branch
      %63 = sbr.rel (0) target = $region17
    $region16: #{tpu_custom_call.1} parent=1 // pred_region
      %65 = vsyncadd [#allocation6], 0
      %s66 = sshll.u32 %s3, 4
      %s67 = int_to_ptr.hbm [resolvable:$true] %s66
      %s68 = sshll.u32 [#allocation7], 4
      %s69 = int_to_ptr.vmem [resolvable:$true] %s68
      %74 = dma.hbm_to_vmem [thread:$0]  %s67, 256, %s69, [#allocation6], 128, 128, 8
    $region17: #{tpu_custom_call.1} parent=1 // pred_fallthru
      _
    // Predicated region
    $region18: #{tpu_custom_call.1} parent=1 // pred_check
      _
    $region19: #{tpu_custom_call.1} parent=1 // pred_check_branch
      %76 = sbr.rel (0) target = $region21
    $region20: #{tpu_custom_call.1} parent=1 // pred_region
      _
    $region21: #{tpu_custom_call.1} parent=1 // pred_fallthru
      _
    // Predicated region
    $region22: #{tpu_custom_call.1} parent=1 // pred_check
      _
    $region23: #{tpu_custom_call.1} parent=1 // pred_check_branch
      %78 = sbr.rel (0) target = $region25
    $region24: #{tpu_custom_call.1} parent=1 // pred_region
      _
    $region25: #{tpu_custom_call.1} parent=1 // pred_fallthru
      _
    // Predicated region
    $region26: #{tpu_custom_call.1} parent=1 // pred_check
      _
    $region27: #{tpu_custom_call.1} parent=1 // pred_check_branch
      %80 = sbr.rel (0) target = $region29
    $region28: #{tpu_custom_call.1} parent=1 // pred_region
      _
    $region29: #{tpu_custom_call.1} parent=1 // pred_fallthru
      _
    // Predicated region
    $region30: #{tpu_custom_call.1} parent=1 // pred_check
      _
    $region31: #{tpu_custom_call.1} parent=1 // pred_check_branch
      %82 = sbr.rel (0) target = $region33
    $region32: #{tpu_custom_call.1} parent=1 // pred_region
      %84 = vsyncadd [#allocation9], 0
      %s85 = sshll.u32 %s7, 4
      %s86 = int_to_ptr.hbm [resolvable:$true] %s85
      %s87 = sshll.u32 [#allocation8], 4
      %s88 = int_to_ptr.vmem [resolvable:$true] %s87
      %93 = dma.hbm_to_vmem [thread:$0]  %s86, 1024, %s88, [#allocation9], 128, 128, 8
    $region33: #{tpu_custom_call.1} parent=1 // pred_fallthru
      _
    // Predicated region
    $region34: #{tpu_custom_call.1} parent=1 // pred_check
      _
    $region35: #{tpu_custom_call.1} parent=1 // pred_check_branch
      %95 = sbr.rel (0) target = $region37
    $region36: #{tpu_custom_call.1} parent=1 // pred_region
      _
    $region37: #{tpu_custom_call.1} parent=1 // pred_fallthru
      _
    // Predicated region
    $region38: #{tpu_custom_call.1} parent=1 // pred_check
      _
    $region39: #{tpu_custom_call.1} parent=1 // pred_check_branch
      %97 = sbr.rel (0) target = $region41
    $region40: #{tpu_custom_call.1} parent=1 // pred_region
      _
    $region41: #{tpu_custom_call.1} parent=1 // pred_fallthru
      _
    // Predicated region
    $region42: #{tpu_custom_call.1} parent=1 // pred_check
      _
    $region43: #{tpu_custom_call.1} parent=1 // pred_check_branch
      %99 = sbr.rel (0) target = $region45
    $region44: #{tpu_custom_call.1} parent=1 // pred_region
      _
    $region45: #{tpu_custom_call.1} parent=1 // pred_fallthru
      _
    // Predicated region
    $region46: #{tpu_custom_call.1} parent=1 // pred_check
      _
    $region47: #{tpu_custom_call.1} parent=1 // pred_check_branch
      %101 = sbr.rel (0) target = $region49
    $region48: #{tpu_custom_call.1} parent=1 // pred_region
      _
    $region49: #{tpu_custom_call.1} parent=1 // pred_fallthru
      _
    // Predicated region
    $region50: #{tpu_custom_call.1} parent=1 // pred_check
      _
    $region51: #{tpu_custom_call.1} parent=1 // pred_check_branch
      %103 = sbr.rel (0) target = $region53
    $region52: #{tpu_custom_call.1} parent=1 // pred_region
      _
    $region53: #{tpu_custom_call.1} parent=1 // pred_fallthru
      _
    // Predicated region
    $region54: #{tpu_custom_call.1} parent=1 // pred_check
      _
    $region55: #{tpu_custom_call.1} parent=1 // pred_check_branch
      %105 = sbr.rel (0) target = $region57
    $region56: #{tpu_custom_call.1} parent=1 // pred_region
      %107 = vsyncadd [#allocation9], 0
      %s108 = sshll.u32 %s13, 4
      %s109 = int_to_ptr.hbm [resolvable:$true] %s108
      %s110 = sshll.u32 [#allocation10], 4
      %s111 = int_to_ptr.vmem [resolvable:$true] %s110
      %116 = dma.hbm_to_vmem [thread:$0]  %s109, 1024, %s111, [#allocation9], 128, 128, 8
    $region57: #{tpu_custom_call.1} parent=1 // pred_fallthru
      _
    // Predicated region
    $region58: #{tpu_custom_call.1} parent=1 // pred_check
      _
    $region59: #{tpu_custom_call.1} parent=1 // pred_check_branch
      %118 = sbr.rel (0) target = $region61
    $region60: #{tpu_custom_call.1} parent=1 // pred_region
      _
    $region61: #{tpu_custom_call.1} parent=1 // pred_fallthru
      _
    // Predicated region
    $region62: #{tpu_custom_call.1} parent=1 // pred_check
      _
    $region63: #{tpu_custom_call.1} parent=1 // pred_check_branch
      %120 = sbr.rel (0) target = $region65
    $region64: #{tpu_custom_call.1} parent=1 // pred_region
      %122 = vsyncadd [#allocation12], 0
      %s123 = sshll.u32 %s15, 4
      %s124 = int_to_ptr.hbm [resolvable:$true] %s123
      %s125 = sshll.u32 [#allocation11], 4
      %s126 = int_to_ptr.vmem [resolvable:$true] %s125
      %131 = dma.hbm_to_vmem [thread:$0]  %s124, 1024, %s126, [#allocation12], 128, 128, 8
    $region65: #{tpu_custom_call.1} parent=1 // pred_fallthru
      _
    // Predicated region
    $region66: #{tpu_custom_call.1} parent=1 // pred_check
      _
    $region67: #{tpu_custom_call.1} parent=1 // pred_check_branch
      %133 = sbr.rel (0) target = $region69
    $region68: #{tpu_custom_call.1} parent=1 // pred_region
      _
    $region69: #{tpu_custom_call.1} parent=1 // pred_fallthru
      _
    // Predicated region
    $region70: #{tpu_custom_call.1} parent=1 // pred_check
      _
    $region71: #{tpu_custom_call.1} parent=1 // pred_check_branch
      %135 = sbr.rel (0) target = $region73
    $region72: #{tpu_custom_call.1} parent=1 // pred_region
      %137 = vsyncadd [#allocation12], 0
      %s138 = sshll.u32 %s17, 4
      %s139 = int_to_ptr.hbm [resolvable:$true] %s138
      %s140 = sshll.u32 [#allocation13], 4
      %s141 = int_to_ptr.vmem [resolvable:$true] %s140
      %146 = dma.hbm_to_vmem [thread:$0]  %s139, 256, %s141, [#allocation12], 128, 128, 8
    $region73: #{tpu_custom_call.1} parent=1 // pred_fallthru
      _
    // Predicated region
    $region74: #{tpu_custom_call.1} parent=1 // pred_check
      _
    $region75: #{tpu_custom_call.1} parent=1 // pred_check_branch
      %148 = sbr.rel (0) target = $region77
    $region76: #{tpu_custom_call.1} parent=1 // pred_region
      _
    $region77: #{tpu_custom_call.1} parent=1 // pred_fallthru
      _
    // Predicated region
    $region78: #{tpu_custom_call.1} parent=1 // pred_check
      _
    $region79: #{tpu_custom_call.1} parent=1 // pred_check_branch
      %150 = sbr.rel (0) target = $region81
    $region80: #{tpu_custom_call.1} parent=1 // pred_region
      %152 = vsyncadd [#allocation15], 0
      %s153 = sshll.u32 %s19, 4
      %s154 = int_to_ptr.hbm [resolvable:$true] %s153
      %s155 = sshll.u32 [#allocation14], 4
      %s156 = int_to_ptr.vmem [resolvable:$true] %s155
      %161 = dma.hbm_to_vmem [thread:$0]  %s154, 512, %s156, [#allocation15], 128, 128, 8
    $region81: #{tpu_custom_call.1} parent=1 // pred_fallthru
      _
    // Predicated region
    $region82: #{tpu_custom_call.1} parent=1 // pred_check
      _
    $region83: #{tpu_custom_call.1} parent=1 // pred_check_branch
      %163 = sbr.rel (0) target = $region85
    $region84: #{tpu_custom_call.1} parent=1 // pred_region
      _
    $region85: #{tpu_custom_call.1} parent=1 // pred_fallthru
      _
    // Predicated region
    $region86: #{tpu_custom_call.1} parent=1 // pred_check
      _
    $region87: #{tpu_custom_call.1} parent=1 // pred_check_branch
      %165 = sbr.rel (0) target = $region89
    $region88: #{tpu_custom_call.1} parent=1 // pred_region
      _
    $region89: #{tpu_custom_call.1} parent=1 // pred_fallthru
      _
    // Predicated region
    $region90: #{tpu_custom_call.1} parent=1 // pred_check
      _
    $region91: #{tpu_custom_call.1} parent=1 // pred_check_branch
      %167 = sbr.rel (0) target = $region93
    $region92: #{tpu_custom_call.1} parent=1 // pred_region
      _
    $region93: #{tpu_custom_call.1} parent=1 // pred_fallthru
      _
    // Predicated region
    $region94: #{tpu_custom_call.1} parent=1 // pred_check
      _
    $region95: #{tpu_custom_call.1} parent=1 // pred_check_branch
      %169 = sbr.rel (0) target = $region97
    $region96: #{tpu_custom_call.1} parent=1 // pred_region
      %171 = dma.done [#allocation3], 256
    $region97: #{tpu_custom_call.1} parent=1 // pred_fallthru
      _
    // Predicated region
    $region98: #{tpu_custom_call.1} parent=1 // pred_check
      _
    $region99: #{tpu_custom_call.1} parent=1 // pred_check_branch
      %173 = sbr.rel (0) target = $region101
    $region100: #{tpu_custom_call.1} parent=1 // pred_region
      %175 = dma.done [#allocation6], 256
    $region101: #{tpu_custom_call.1} parent=1 // pred_fallthru
      _
    // Predicated region
    $region102: #{tpu_custom_call.1} parent=1 // pred_check
      _
    $region103: #{tpu_custom_call.1} parent=1 // pred_check_branch
      %177 = sbr.rel (0) target = $region105
    $region104: #{tpu_custom_call.1} parent=1 // pred_region
      %179 = dma.done [#allocation6], 256
    $region105: #{tpu_custom_call.1} parent=1 // pred_fallthru
      _
    // Predicated region
    $region106: #{tpu_custom_call.1} parent=1 // pred_check
      _
    $region107: #{tpu_custom_call.1} parent=1 // pred_check_branch
      %181 = sbr.rel (0) target = $region109
    $region108: #{tpu_custom_call.1} parent=1 // pred_region
      %183 = dma.done [#allocation9], 1024
    $region109: #{tpu_custom_call.1} parent=1 // pred_fallthru
      _
    // Predicated region
    $region110: #{tpu_custom_call.1} parent=1 // pred_check
      _
    $region111: #{tpu_custom_call.1} parent=1 // pred_check_branch
      %185 = sbr.rel (0) target = $region113
    $region112: #{tpu_custom_call.1} parent=1 // pred_region
      %187 = dma.done [#allocation9], 1024
    $region113: #{tpu_custom_call.1} parent=1 // pred_fallthru
      _
    // Predicated region
    $region114: #{tpu_custom_call.1} parent=1 // pred_check
      _
    $region115: #{tpu_custom_call.1} parent=1 // pred_check_branch
      %189 = sbr.rel (0) target = $region117
    $region116: #{tpu_custom_call.1} parent=1 // pred_region
      %191 = dma.done [#allocation12], 1024
    $region117: #{tpu_custom_call.1} parent=1 // pred_fallthru
      _
    // Predicated region
    $region118: #{tpu_custom_call.1} parent=1 // pred_check
      _
    $region119: #{tpu_custom_call.1} parent=1 // pred_check_branch
      %193 = sbr.rel (0) target = $region121
    $region120: #{tpu_custom_call.1} parent=1 // pred_region
      %195 = dma.done [#allocation12], 256
    $region121: #{tpu_custom_call.1} parent=1 // pred_fallthru
      _
    // Predicated region
    $region122: #{tpu_custom_call.1} parent=1 // pred_check
      _
    $region123: #{tpu_custom_call.1} parent=1 // pred_check_branch
      %197 = sbr.rel (0) target = $region125
    $region124: #{tpu_custom_call.1} parent=1 // pred_region
      %199 = dma.done [#allocation15], 512
    $region125: #{tpu_custom_call.1} parent=1 // pred_fallthru
      _
    %v200 = vld [vmem:[#allocation2] sm:$0xff]
    %v201 = vld [vmem:[#allocation2 + $0x8] sm:$0xff]
    %v202 = vld [vmem:[#allocation5] sm:$0xff]
    %v203 = vld [vmem:[#allocation5 + $0x8] sm:$0xff]
    %v204 = vld [vmem:[#allocation7] sm:$0xff]
    %v205 = vld [vmem:[#allocation7 + $0x8] sm:$0xff]
    %vm206 = vcmask 130048
    %v208 = vsel %vm206, %v200, 0
    %v211 = vsel %vm206, %v201, 0
    %213 = vmatpush.msra.mxu0 0.0
    %214 = vmatpush.msra.mxu0 0.0
    %215 = vmatpush.msra.mxu0 0.0
    %216 = vmatpush.msra.mxu0 0.0
    %217 = vmatpush.msra.mxu0 0.0
    %218 = vmatpush.msra.mxu0 0.0
    %219 = vmatpush.msra.mxu0 0.0
    %220 = vmatpush.msra.mxu0 0.0
    %221 = vmatpush.msra.mxu0 0.0
    %222 = vmatpush.msra.mxu0 0.0
    %223 = vmatpush.msra.mxu0 0.0
    %224 = vmatpush.msra.mxu0 0.0
    %225 = vmatpush.msra.mxu0 0.0
    %226 = vmatpush.msra.mxu0 0.0
    %227 = vmatpush.msra.mxu0 %v205
    %228 = vmatpush.msra.mxu0 %v204
    %229 = vmatmul.f32.gmra.mxu0 %v208
    %v230 = vpop.f32.mrf.mxu0
    %v231 = vadd.f32 0.0, %v230
    %232 = vmatmul.f32.gmra.mxu0 %v211
    %v233 = vpop.f32.mrf.mxu0
    %v234 = vadd.f32 0.0, %v233
    %235 = vdwg.mxu0
    %v236 = vld [vmem:[%s4] sm:$0x1]
    %v238 = vperm.slane %v236, 0
    %v241 = vsel %vm206, %v202, 0
    %v244 = vsel %vm206, %v203, 0
    %246 = vmatpush.msra.mxu0 0.0
    %247 = vmatpush.msra.mxu0 0.0
    %248 = vmatpush.msra.mxu0 0.0
    %249 = vmatpush.msra.mxu0 0.0
    %250 = vmatpush.msra.mxu0 0.0
    %251 = vmatpush.msra.mxu0 0.0
    %252 = vmatpush.msra.mxu0 0.0
    %253 = vmatpush.msra.mxu0 0.0
    %254 = vmatpush.msra.mxu0 0.0
    %255 = vmatpush.msra.mxu0 0.0
    %256 = vmatpush.msra.mxu0 0.0
    %257 = vmatpush.msra.mxu0 0.0
    %258 = vmatpush.msra.mxu0 0.0
    %259 = vmatpush.msra.mxu0 0.0
    %260 = vmatpush.msra.mxu0 %v234
    %261 = vmatpush.msra.mxu0 %v231
    %262 = vmatmul.f32.gmra.mxu0 %v241
    %v263 = vpop.f32.mrf.mxu0
    %v264 = vadd.f32 %v238, %v263
    %265 = vmatmul.f32.gmra.mxu0 %v244
    %v266 = vpop.f32.mrf.mxu0
    %v267 = vadd.f32 %v238, %v266
    %268 = vdwg.mxu0
    %v269 = vmax.f32 %v264, 0.0
    %v270 = vmax.f32 %v267, 0.0
    %v271 = vld [vmem:[%s5] sm:$0xff]
    %v272 = vld [vmem:[%s5 + $0x8] sm:$0xff]
    %v273 = vld [vmem:[%s5 + $0x10] sm:$0xff]
    %v274 = vld [vmem:[%s5 + $0x18] sm:$0xff]
    %v275 = vld [vmem:[%s5 + $0x20] sm:$0xff]
    %v276 = vld [vmem:[%s5 + $0x28] sm:$0xff]
    %v277 = vld [vmem:[%s5 + $0x30] sm:$0xff]
    %v278 = vld [vmem:[%s5 + $0x38] sm:$0xff]
    %vm279 = vcmask 523264
    %v281 = vsel %vm279, %v269, 0
    %v284 = vsel %vm279, %v270, 0
    %286 = vmatpush.msra.mxu0 0.0
    %287 = vmatpush.msra.mxu0 0.0
    %288 = vmatpush.msra.mxu0 0.0
    %289 = vmatpush.msra.mxu0 0.0
    %290 = vmatpush.msra.mxu0 0.0
    %291 = vmatpush.msra.mxu0 0.0
    %292 = vmatpush.msra.mxu0 0.0
    %293 = vmatpush.msra.mxu0 0.0
    %294 = vmatpush.msra.mxu0 %v278
    %295 = vmatpush.msra.mxu0 %v277
    %296 = vmatpush.msra.mxu0 %v276
    %297 = vmatpush.msra.mxu0 %v275
    %298 = vmatpush.msra.mxu0 %v274
    %299 = vmatpush.msra.mxu0 %v273
    %300 = vmatpush.msra.mxu0 %v272
    %301 = vmatpush.msra.mxu0 %v271
    %302 = vmatmul.f32.gmra.mxu0 %v281
    %v303 = vpop.f32.mrf.mxu0
    %v304 = vadd.f32 0.0, %v303
    %305 = vmatmul.f32.gmra.mxu0 %v284
    %v306 = vpop.f32.mrf.mxu0
    %v307 = vadd.f32 0.0, %v306
    %308 = vdwg.mxu0
    %v309 = vld [vmem:[%s6] sm:$0x1]
    %v311 = vperm.slane %v309, 0
    %313 = vmatpush.msra.mxu0 0.0
    %314 = vmatpush.msra.mxu0 0.0
    %315 = vmatpush.msra.mxu0 0.0
    %316 = vmatpush.msra.mxu0 0.0
    %317 = vmatpush.msra.mxu0 0.0
    %318 = vmatpush.msra.mxu0 0.0
    %319 = vmatpush.msra.mxu0 0.0
    %320 = vmatpush.msra.mxu0 0.0
    %321 = vmatpush.msra.mxu0 0.0
    %322 = vmatpush.msra.mxu0 0.0
    %323 = vmatpush.msra.mxu0 0.0
    %324 = vmatpush.msra.mxu0 0.0
    %325 = vmatpush.msra.mxu0 0.0
    %326 = vmatpush.msra.mxu0 0.0
    %327 = vmatpush.msra.mxu0 %v307
    %328 = vmatpush.msra.mxu0 %v304
    %329 = vmatmul.f32.gmra.mxu0 %v241
    %v330 = vpop.f32.mrf.mxu0
    %v331 = vadd.f32 %v311, %v330
    %332 = vmatmul.f32.gmra.mxu0 %v244
    %v333 = vpop.f32.mrf.mxu0
    %v334 = vadd.f32 %v311, %v333
    %335 = vdwg.mxu0
    %v336 = vmax.f32 %v331, 0.0
    %v337 = vmax.f32 %v334, 0.0
    %v338 = vld [vmem:[#allocation8] sm:$0xff]
    %v339 = vld [vmem:[#allocation8 + $0x8] sm:$0xff]
    %v340 = vld [vmem:[#allocation8 + $0x10] sm:$0xff]
    %v341 = vld [vmem:[#allocation8 + $0x18] sm:$0xff]
    %v342 = vld [vmem:[#allocation8 + $0x20] sm:$0xff]
    %v343 = vld [vmem:[#allocation8 + $0x28] sm:$0xff]
    %v344 = vld [vmem:[#allocation8 + $0x30] sm:$0xff]
    %v345 = vld [vmem:[#allocation8 + $0x38] sm:$0xff]
    %v347 = vsel %vm279, %v336, 0
    %v350 = vsel %vm279, %v337, 0
    %352 = vmatpush.msra.mxu0 0.0
    %353 = vmatpush.msra.mxu0 0.0
    %354 = vmatpush.msra.mxu0 0.0
    %355 = vmatpush.msra.mxu0 0.0
    %356 = vmatpush.msra.mxu0 0.0
    %357 = vmatpush.msra.mxu0 0.0
    %358 = vmatpush.msra.mxu0 0.0
    %359 = vmatpush.msra.mxu0 0.0
    %360 = vmatpush.msra.mxu0 %v345
    %361 = vmatpush.msra.mxu0 %v344
    %362 = vmatpush.msra.mxu0 %v343
    %363 = vmatpush.msra.mxu0 %v342
    %364 = vmatpush.msra.mxu0 %v341
    %365 = vmatpush.msra.mxu0 %v340
    %366 = vmatpush.msra.mxu0 %v339
    %367 = vmatpush.msra.mxu0 %v338
    %368 = vmatmul.f32.gmra.mxu0 %v347
    %v369 = vpop.f32.mrf.mxu0
    %v370 = vadd.f32 0.0, %v369
    %371 = vmatmul.f32.gmra.mxu0 %v350
    %v372 = vpop.f32.mrf.mxu0
    %v373 = vadd.f32 0.0, %v372
    %374 = vdwg.mxu0
    %v375 = vld [vmem:[%s8] sm:$0x1]
    %v377 = vperm.slane %v375, 0
    %379 = vmatpush.msra.mxu0 0.0
    %380 = vmatpush.msra.mxu0 0.0
    %381 = vmatpush.msra.mxu0 0.0
    %382 = vmatpush.msra.mxu0 0.0
    %383 = vmatpush.msra.mxu0 0.0
    %384 = vmatpush.msra.mxu0 0.0
    %385 = vmatpush.msra.mxu0 0.0
    %386 = vmatpush.msra.mxu0 0.0
    %387 = vmatpush.msra.mxu0 0.0
    %388 = vmatpush.msra.mxu0 0.0
    %389 = vmatpush.msra.mxu0 0.0
    %390 = vmatpush.msra.mxu0 0.0
    %391 = vmatpush.msra.mxu0 0.0
    %392 = vmatpush.msra.mxu0 0.0
    %393 = vmatpush.msra.mxu0 %v373
    %394 = vmatpush.msra.mxu0 %v370
    %395 = vmatmul.f32.gmra.mxu0 %v241
    %v396 = vpop.f32.mrf.mxu0
    %v397 = vadd.f32 %v377, %v396
    %398 = vmatmul.f32.gmra.mxu0 %v244
    %v399 = vpop.f32.mrf.mxu0
    %v400 = vadd.f32 %v377, %v399
    %401 = vdwg.mxu0
    %v402 = vmax.f32 %v397, 0.0
    %v403 = vmax.f32 %v400, 0.0
    %v404 = vld [vmem:[%s9] sm:$0xff]
    %v405 = vld [vmem:[%s9 + $0x8] sm:$0xff]
    %v406 = vld [vmem:[%s9 + $0x10] sm:$0xff]
    %v407 = vld [vmem:[%s9 + $0x18] sm:$0xff]
    %v408 = vld [vmem:[%s9 + $0x20] sm:$0xff]
    %v409 = vld [vmem:[%s9 + $0x28] sm:$0xff]
    %v410 = vld [vmem:[%s9 + $0x30] sm:$0xff]
    %v411 = vld [vmem:[%s9 + $0x38] sm:$0xff]
    %v413 = vsel %vm279, %v402, 0
    %v416 = vsel %vm279, %v403, 0
    %418 = vmatpush.msra.mxu0 0.0
    %419 = vmatpush.msra.mxu0 0.0
    %420 = vmatpush.msra.mxu0 0.0
    %421 = vmatpush.msra.mxu0 0.0
    %422 = vmatpush.msra.mxu0 0.0
    %423 = vmatpush.msra.mxu0 0.0
    %424 = vmatpush.msra.mxu0 0.0
    %425 = vmatpush.msra.mxu0 0.0
    %426 = vmatpush.msra.mxu0 %v411
    %427 = vmatpush.msra.mxu0 %v410
    %428 = vmatpush.msra.mxu0 %v409
    %429 = vmatpush.msra.mxu0 %v408
    %430 = vmatpush.msra.mxu0 %v407
    %431 = vmatpush.msra.mxu0 %v406
    %432 = vmatpush.msra.mxu0 %v405
    %433 = vmatpush.msra.mxu0 %v404
    %434 = vmatmul.f32.gmra.mxu0 %v413
    %v435 = vpop.f32.mrf.mxu0
    %v436 = vadd.f32 0.0, %v435
    %437 = vmatmul.f32.gmra.mxu0 %v416
    %v438 = vpop.f32.mrf.mxu0
    %v439 = vadd.f32 0.0, %v438
    %440 = vdwg.mxu0
    %v441 = vld [vmem:[%s10] sm:$0x1]
    %v443 = vperm.slane %v441, 0
    %445 = vmatpush.msra.mxu0 0.0
    %446 = vmatpush.msra.mxu0 0.0
    %447 = vmatpush.msra.mxu0 0.0
    %448 = vmatpush.msra.mxu0 0.0
    %449 = vmatpush.msra.mxu0 0.0
    %450 = vmatpush.msra.mxu0 0.0
    %451 = vmatpush.msra.mxu0 0.0
    %452 = vmatpush.msra.mxu0 0.0
    %453 = vmatpush.msra.mxu0 0.0
    %454 = vmatpush.msra.mxu0 0.0
    %455 = vmatpush.msra.mxu0 0.0
    %456 = vmatpush.msra.mxu0 0.0
    %457 = vmatpush.msra.mxu0 0.0
    %458 = vmatpush.msra.mxu0 0.0
    %459 = vmatpush.msra.mxu0 %v439
    %460 = vmatpush.msra.mxu0 %v436
    %461 = vmatmul.f32.gmra.mxu0 %v241
    %v462 = vpop.f32.mrf.mxu0
    %v463 = vadd.f32 %v443, %v462
    %464 = vmatmul.f32.gmra.mxu0 %v244
    %v465 = vpop.f32.mrf.mxu0
    %v466 = vadd.f32 %v443, %v465
    %467 = vdwg.mxu0
    %v468 = vmax.f32 %v463, 0.0
    %v469 = vmax.f32 %v466, 0.0
    %v470 = vld [vmem:[%s11] sm:$0xff]
    %v471 = vld [vmem:[%s11 + $0x8] sm:$0xff]
    %v472 = vld [vmem:[%s11 + $0x10] sm:$0xff]
    %v473 = vld [vmem:[%s11 + $0x18] sm:$0x3f]
    %s474 = scalar_lea.vmem %s11, 32
    %v475 = vld [vmem:[%s474] sm:$0xff]
    %v476 = vld [vmem:[%s474 + $0x8] sm:$0xff]
    %v477 = vld [vmem:[%s474 + $0x10] sm:$0xff]
    %v478 = vld [vmem:[%s474 + $0x18] sm:$0x3f]
    %v481 = vrot.slane %v468, 1
    %vm482 = vcmask 1041409
    %v483 = vsel %vm482, %v469, %v481
    %vm484 = vcmask 244736
    %v485 = vsel %vm484, %v483, 0
    %vm487 = vcmask 1045504
    %v489 = vsel %vm487, %v478, 0
    %491 = vmatpush.msra.mxu0 0.0
    %492 = vmatpush.msra.mxu0 0.0
    %493 = vmatpush.msra.mxu0 0.0
    %494 = vmatpush.msra.mxu0 0.0
    %495 = vmatpush.msra.mxu0 0.0
    %496 = vmatpush.msra.mxu0 0.0
    %497 = vmatpush.msra.mxu0 0.0
    %498 = vmatpush.msra.mxu0 0.0
    %499 = vmatpush.msra.mxu0 0.0
    %500 = vmatpush.msra.mxu0 0.0
    %501 = vmatpush.msra.mxu0 0.0
    %502 = vmatpush.msra.mxu0 0.0
    %503 = vmatpush.msra.mxu0 %v489
    %504 = vmatpush.msra.mxu0 %v477
    %505 = vmatpush.msra.mxu0 %v476
    %506 = vmatpush.msra.mxu0 %v475
    %507 = vmatmul.f32.gmra.mxu0 %v485
    %v508 = vpop.f32.mrf.mxu0
    %v509 = vadd.f32 0.0, %v508
    %510 = vdwg.mxu0
    %v511 = vrot.slane %v469, 7
    %v512 = vsel %vm482, %v511, %v468
    %v513 = vsel %vm484, %v512, 0
    %v516 = vsel %vm487, %v473, 0
    %518 = vmatpush.msra.mxu0 0.0
    %519 = vmatpush.msra.mxu0 0.0
    %520 = vmatpush.msra.mxu0 0.0
    %521 = vmatpush.msra.mxu0 0.0
    %522 = vmatpush.msra.mxu0 0.0
    %523 = vmatpush.msra.mxu0 0.0
    %524 = vmatpush.msra.mxu0 0.0
    %525 = vmatpush.msra.mxu0 0.0
    %526 = vmatpush.msra.mxu0 0.0
    %527 = vmatpush.msra.mxu0 0.0
    %528 = vmatpush.msra.mxu0 0.0
    %529 = vmatpush.msra.mxu0 0.0
    %530 = vmatpush.msra.mxu0 %v516
    %531 = vmatpush.msra.mxu0 %v472
    %532 = vmatpush.msra.mxu0 %v471
    %533 = vmatpush.msra.mxu0 %v470
    %534 = vmatmul.f32.gmra.mxu0 %v513
    %v535 = vpop.f32.mrf.mxu0
    %v536 = vadd.f32 %v509, %v535
    %537 = vdwg.mxu0
    %s538 = scalar_lea.vmem %s11, 64
    %v539 = vld [vmem:[%s538] sm:$0xff]
    %v540 = vld [vmem:[%s538 + $0x8] sm:$0xff]
    %v541 = vld [vmem:[%s538 + $0x10] sm:$0xff]
    %v542 = vld [vmem:[%s538 + $0x18] sm:$0x3f]
    %v543 = vrot.slane %v468, 2
    %v544 = vrot.slane %v469, 1
    %v545 = vsel %vm482, %v544, %v543
    %v546 = vsel %vm484, %v545, 0
    %v549 = vsel %vm487, %v542, 0
    %551 = vmatpush.msra.mxu0 0.0
    %552 = vmatpush.msra.mxu0 0.0
    %553 = vmatpush.msra.mxu0 0.0
    %554 = vmatpush.msra.mxu0 0.0
    %555 = vmatpush.msra.mxu0 0.0
    %556 = vmatpush.msra.mxu0 0.0
    %557 = vmatpush.msra.mxu0 0.0
    %558 = vmatpush.msra.mxu0 0.0
    %559 = vmatpush.msra.mxu0 0.0
    %560 = vmatpush.msra.mxu0 0.0
    %561 = vmatpush.msra.mxu0 0.0
    %562 = vmatpush.msra.mxu0 0.0
    %563 = vmatpush.msra.mxu0 %v549
    %564 = vmatpush.msra.mxu0 %v541
    %565 = vmatpush.msra.mxu0 %v540
    %566 = vmatpush.msra.mxu0 %v539
    %567 = vmatmul.f32.gmra.mxu0 %v546
    %v568 = vpop.f32.mrf.mxu0
    %v569 = vadd.f32 0.0, %v568
    %570 = vdwg.mxu0
    %v571 = vadd.f32 %v536, %v569
    %v572 = vld [vmem:[%s12] sm:$0x1]
    %v574 = vperm.slane %v572, 0
    %v576 = vadd.f32 %v571, %v574
    %v577 = vmax.f32 %v576, 0.0
    %v578 = vld [vmem:[%s2] sm:$0x3]
    %v579 = vld [vmem:[#allocation13] sm:$0xff]
    %v580 = vld [vmem:[#allocation13 + $0x8] sm:$0xff]
    %v581 = vld [vmem:[%s18] sm:$0x1]
    %v583 = vperm.slane %v581, 0
    %v586 = vsel %vm206, %v578, 0
    %588 = vmatpush.msra.mxu0 0.0
    %589 = vmatpush.msra.mxu0 0.0
    %590 = vmatpush.msra.mxu0 0.0
    %591 = vmatpush.msra.mxu0 0.0
    %592 = vmatpush.msra.mxu0 0.0
    %593 = vmatpush.msra.mxu0 0.0
    %594 = vmatpush.msra.mxu0 0.0
    %595 = vmatpush.msra.mxu0 0.0
    %596 = vmatpush.msra.mxu0 0.0
    %597 = vmatpush.msra.mxu0 0.0
    %598 = vmatpush.msra.mxu0 0.0
    %599 = vmatpush.msra.mxu0 0.0
    %600 = vmatpush.msra.mxu0 0.0
    %601 = vmatpush.msra.mxu0 0.0
    %602 = vmatpush.msra.mxu0 %v580
    %603 = vmatpush.msra.mxu0 %v579
    %604 = vmatmul.f32.gmra.mxu0 %v586
    %v605 = vpop.f32.mrf.mxu0
    %v606 = vadd.f32 %v583, %v605
    %607 = vdwg.mxu0
    %v608 = vmax.f32 %v606, 0.0
    %v609 = vld [vmem:[#allocation14] sm:$0xff]
    %v610 = vld [vmem:[#allocation14 + $0x8] sm:$0xff]
    %v611 = vld [vmem:[#allocation14 + $0x10] sm:$0xff]
    %v612 = vld [vmem:[#allocation14 + $0x18] sm:$0xff]
    %v613 = vld [vmem:[%s20] sm:$0x1]
    %v615 = vperm.slane %v613, 0
    %vm617 = vcmask 261120
    %v619 = vsel %vm617, %v608, 0
    %621 = vmatpush.msra.mxu0 0.0
    %622 = vmatpush.msra.mxu0 0.0
    %623 = vmatpush.msra.mxu0 0.0
    %624 = vmatpush.msra.mxu0 0.0
    %625 = vmatpush.msra.mxu0 0.0
    %626 = vmatpush.msra.mxu0 0.0
    %627 = vmatpush.msra.mxu0 0.0
    %628 = vmatpush.msra.mxu0 0.0
    %629 = vmatpush.msra.mxu0 0.0
    %630 = vmatpush.msra.mxu0 0.0
    %631 = vmatpush.msra.mxu0 0.0
    %632 = vmatpush.msra.mxu0 0.0
    %633 = vmatpush.msra.mxu0 %v612
    %634 = vmatpush.msra.mxu0 %v611
    %635 = vmatpush.msra.mxu0 %v610
    %636 = vmatpush.msra.mxu0 %v609
    %637 = vmatmul.f32.gmra.mxu0 %v619
    %v638 = vpop.f32.mrf.mxu0
    %v639 = vadd.f32 %v615, %v638
    %640 = vdwg.mxu0
    %v641 = vmax.f32 %v639, 0.0
    %v642 = vadd.f32 %v577, %v641
    %v643 = vld [vmem:[#allocation10] sm:$0xff]
    %v644 = vld [vmem:[#allocation10 + $0x8] sm:$0xff]
    %v645 = vld [vmem:[#allocation10 + $0x10] sm:$0xff]
    %v646 = vld [vmem:[#allocation10 + $0x18] sm:$0xff]
    %v647 = vld [vmem:[#allocation10 + $0x20] sm:$0xff]
    %v648 = vld [vmem:[#allocation10 + $0x28] sm:$0xff]
    %v649 = vld [vmem:[#allocation10 + $0x30] sm:$0xff]
    %v650 = vld [vmem:[#allocation10 + $0x38] sm:$0xff]
    %v651 = vld [vmem:[%s14] sm:$0x1]
    %v653 = vperm.slane %v651, 0
    %v656 = vsel %vm279, %v642, 0
    %658 = vmatpush.msra.mxu0 0.0
    %659 = vmatpush.msra.mxu0 0.0
    %660 = vmatpush.msra.mxu0 0.0
    %661 = vmatpush.msra.mxu0 0.0
    %662 = vmatpush.msra.mxu0 0.0
    %663 = vmatpush.msra.mxu0 0.0
    %664 = vmatpush.msra.mxu0 0.0
    %665 = vmatpush.msra.mxu0 0.0
    %666 = vmatpush.msra.mxu0 %v650
    %667 = vmatpush.msra.mxu0 %v649
    %668 = vmatpush.msra.mxu0 %v648
    %669 = vmatpush.msra.mxu0 %v647
    %670 = vmatpush.msra.mxu0 %v646
    %671 = vmatpush.msra.mxu0 %v645
    %672 = vmatpush.msra.mxu0 %v644
    %673 = vmatpush.msra.mxu0 %v643
    %674 = vmatmul.f32.gmra.mxu0 %v656
    %v675 = vpop.f32.mrf.mxu0
    %v676 = vadd.f32 %v653, %v675
    %677 = vdwg.mxu0
    %v678 = vmax.f32 %v676, 0.0
    %v679 = vld [vmem:[#allocation11] sm:$0xff]
    %v680 = vld [vmem:[#allocation11 + $0x8] sm:$0xff]
    %v681 = vld [vmem:[#allocation11 + $0x10] sm:$0xff]
    %v682 = vld [vmem:[#allocation11 + $0x18] sm:$0xff]
    %v683 = vld [vmem:[#allocation11 + $0x20] sm:$0xff]
    %v684 = vld [vmem:[#allocation11 + $0x28] sm:$0xff]
    %v685 = vld [vmem:[#allocation11 + $0x30] sm:$0xff]
    %v686 = vld [vmem:[#allocation11 + $0x38] sm:$0xff]
    %v687 = vld [vmem:[%s16] sm:$0x1]
    %v689 = vperm.slane %v687, 0
    %v692 = vsel %vm279, %v678, 0
    %694 = vmatpush.msra.mxu0 0.0
    %695 = vmatpush.msra.mxu0 0.0
    %696 = vmatpush.msra.mxu0 0.0
    %697 = vmatpush.msra.mxu0 0.0
    %698 = vmatpush.msra.mxu0 0.0
    %699 = vmatpush.msra.mxu0 0.0
    %700 = vmatpush.msra.mxu0 0.0
    %701 = vmatpush.msra.mxu0 0.0
    %702 = vmatpush.msra.mxu0 %v686
    %703 = vmatpush.msra.mxu0 %v685
    %704 = vmatpush.msra.mxu0 %v684
    %705 = vmatpush.msra.mxu0 %v683
    %706 = vmatpush.msra.mxu0 %v682
    %707 = vmatpush.msra.mxu0 %v681
    %708 = vmatpush.msra.mxu0 %v680
    %709 = vmatpush.msra.mxu0 %v679
    %710 = vmatmul.f32.gmra.mxu0 %v692
    %v711 = vpop.f32.mrf.mxu0
    %v712 = vadd.f32 %v689, %v711
    %713 = vdwg.mxu0
    %v714 = vmax.f32 %v712, 0.0
    %v715 = vld [vmem:[%s21] sm:$0xff]
    %v716 = vld [vmem:[%s21 + $0x8] sm:$0xff]
    %v717 = vld [vmem:[%s21 + $0x10] sm:$0xff]
    %v718 = vld [vmem:[%s21 + $0x18] sm:$0xff]
    %v719 = vld [vmem:[%s21 + $0x20] sm:$0xff]
    %v720 = vld [vmem:[%s21 + $0x28] sm:$0xff]
    %v721 = vld [vmem:[%s21 + $0x30] sm:$0xff]
    %v722 = vld [vmem:[%s21 + $0x38] sm:$0xff]
    %v723 = vld [vmem:[%s22] sm:$0x1]
    %v725 = vperm.slane %v723, 0
    %v728 = vsel %vm279, %v714, 0
    %730 = vmatpush.msra.mxu0 0.0
    %731 = vmatpush.msra.mxu0 0.0
    %732 = vmatpush.msra.mxu0 0.0
    %733 = vmatpush.msra.mxu0 0.0
    %734 = vmatpush.msra.mxu0 0.0
    %735 = vmatpush.msra.mxu0 0.0
    %736 = vmatpush.msra.mxu0 0.0
    %737 = vmatpush.msra.mxu0 0.0
    %738 = vmatpush.msra.mxu0 %v722
    %739 = vmatpush.msra.mxu0 %v721
    %740 = vmatpush.msra.mxu0 %v720
    %741 = vmatpush.msra.mxu0 %v719
    %742 = vmatpush.msra.mxu0 %v718
    %743 = vmatpush.msra.mxu0 %v717
    %744 = vmatpush.msra.mxu0 %v716
    %745 = vmatpush.msra.mxu0 %v715
    %746 = vmatmul.f32.gmra.mxu0 %v728
    %v747 = vpop.f32.mrf.mxu0
    %v748 = vadd.f32 %v725, %v747
    %749 = vdwg.mxu0
    %vm750 = vcmask 25600
    %751 = vst.msk [vmem:[#allocation16] sm:$0x3] %vm750, %v748
    // Predicated region
    $region126: #{tpu_custom_call.1} parent=1 // pred_check
      _
    $region127: #{tpu_custom_call.1} parent=1 // pred_check_branch
      %753 = sbr.rel (0) target = $region129
    $region128: #{tpu_custom_call.1} parent=1 // pred_region
      %755 = vsyncadd [#allocation4], 0
      %s757 = sshll.u32 [#allocation16], 4
      %s758 = int_to_ptr.vmem [resolvable:$true] %s757
      %s759 = sshll.u32 %s23, 4
      %s760 = int_to_ptr.hbm [resolvable:$true] %s759
      %762 = dma.vmem_to_hbm [thread:$0]  %s758, 32, %s760, [#allocation4]
    $region129: #{tpu_custom_call.1} parent=1 // pred_fallthru
      _
    // Predicated region
    $region130: #{tpu_custom_call.1} parent=1 // pred_check
      _
    $region131: #{tpu_custom_call.1} parent=1 // pred_check_branch
      %764 = sbr.rel (0) target = $region133
    $region132: #{tpu_custom_call.1} parent=1 // pred_region
      %766 = dma.done [#allocation4], 32
    $region133: #{tpu_custom_call.1} parent=1 // pred_fallthru
      _
    %767 = vsyncpa [#allocation3], 1
    %768 = vsyncpa [#allocation6], 1
    %769 = vsyncpa [#allocation9], 1
    %770 = vsyncpa [#allocation12], 1
    %771 = vsyncpa [#allocation15], 1
    %772 = vsyncpa [#allocation4], 1

</llo_original>
